<compile_context>
chip_gen: v7x
topology: tpu7x:2x2x1
jax: 0.10.0
libtpu: 0.0.40
codegen_flags: <defaults>
</compile_context>

<pallas_src>
import functools

import numpy as np
import jax
import jax.numpy as jnp
from jax.experimental import pallas as pl
from jax.experimental.pallas import tpu as pltpu

_SUBLANE = 8
_LANE = 128
_ROW_MULT = 32   # sublane multiple that is safe for f32 / bf16 / int8 blocks


def _round_up(x, m):
    return -(-x // m) * m


def _cdiv(a, b):
    return -(-a // b)


# ----------------------------------------------------------------------------
# Hungarian (maximum-weight linear assignment).
# TODO(synk): the Hungarian algorithm is an inherently sequential combinatorial
# routine with no clean Pallas equivalent; it runs host-side in numpy (mirrors
# pygmtools' per-instance scipy.linear_sum_assignment discretization).
# ----------------------------------------------------------------------------
def _hungarian_max_np(score):
    """Max-weight assignment on a rectangular score matrix -> 0/1 matrix."""
    score = np.asarray(score, dtype=np.float64)
    n1, n2 = score.shape
    n = max(n1, n2)
    cost = np.zeros((n, n), dtype=np.float64)
    cost[:n1, :n2] = -score  # maximize -> minimize; dummy rows/cols cost 0
    INF = 1e18
    u = np.zeros(n + 1)
    v = np.zeros(n + 1)
    p = np.zeros(n + 1, dtype=np.int64)
    way = np.zeros(n + 1, dtype=np.int64)
    for i in range(1, n + 1):
        p[0] = i
        j0 = 0
        minv = np.full(n + 1, INF)
        used = np.zeros(n + 1, dtype=bool)
        while True:
            used[j0] = True
            i0 = p[j0]
            delta = INF
            j1 = 0
            for j in range(1, n + 1):
                if not used[j]:
                    cur = cost[i0 - 1, j - 1] - u[i0] - v[j]
                    if cur < minv[j]:
                        minv[j] = cur
                        way[j] = j0
                    if minv[j] < delta:
                        delta = minv[j]
                        j1 = j
            for j in range(n + 1):
                if used[j]:
                    u[p[j]] += delta
                    v[j] -= delta
                else:
                    minv[j] -= delta
            j0 = j1
            if p[j0] == 0:
                break
        while True:
            j1 = way[j0]
            p[j0] = p[j1]
            j0 = j1
            if j0 == 0:
                break
    out = np.zeros((n1, n2), dtype=np.float32)
    for j in range(1, n + 1):
        r = p[j] - 1
        c = j - 1
        if 0 <= r < n1 and 0 <= c < n2:
            out[r, c] = 1.0
    return out


def hungarian_batch_np(pred_np, src_np, tgt_np):
    """Per-instance Hungarian discretization on the host -> (B, N1, N2) 0/1 float32."""
    dis = np.zeros(pred_np.shape, dtype=np.float32)
    for b in range(pred_np.shape[0]):
        n1, n2 = int(src_np[b]), int(tgt_np[b])
        dis[b, :n1, :n2] = _hungarian_max_np(pred_np[b, :n1, :n2])
    return dis


# ----------------------------------------------------------------------------
# Tile selection (HBM-bound elementwise reduction; tiles sized from VMEM capacity).
# ----------------------------------------------------------------------------
def _vmem_capacity_bytes():
    try:
        return int(pltpu.get_tpu_info().vmem_capacity_bytes)
    except Exception:
        return 128 * 1024 * 1024


def _choose_tiles(B, N1, N2, bytes_per_elem):
    """Return (TB, TR, TN, BP, N1P, N2P, nbb, nrb, ncb, vmem_limit)."""
    vmem_cap = _vmem_capacity_bytes()
    # ~12 MiB streamed input per step on 128 MiB chips (v5e/v6e), ~8 MiB on v7x (64 MiB).
    budget = int(min(12 << 20, vmem_cap // 8))

    N1P_min = _round_up(max(N1, 1), _ROW_MULT)
    N2P_min = _round_up(max(N2, 1), _LANE)
    plane_bytes = N1P_min * N2P_min * bytes_per_elem
    row_bytes = N2P_min * bytes_per_elem

    if plane_bytes <= budget:
        # Whole plane per step; fuse several batch instances into one block.
        TN, N2P, ncb = N2P_min, N2P_min, 1
        TR, N1P, nrb = N1P_min, N1P_min, 1
        tb_max = max(1, min(B, budget // plane_bytes))
        nbb = _cdiv(B, tb_max)
        TB = _cdiv(B, nbb)
        # Megacore: guarantee >= 2 (parallel) grid blocks whenever possible.
        if nbb * nrb == 1:
            if B > 1:
                nbb, TB = 2, _cdiv(B, 2)
            elif N1P_min >= 2 * _ROW_MULT:
                nrb = 2
                TR = _round_up(_cdiv(N1P_min, 2), _ROW_MULT)
                N1P = TR * 2
        BP = TB * nbb
    elif _ROW_MULT * row_bytes <= budget:
        # Row tiling, full lane width (lane-dense DMAs).
        TB, BP, nbb = 1, B, B
        TN, N2P, ncb = N2P_min, N2P_min, 1
        tr_max = max(_ROW_MULT, (budget // row_bytes) // _ROW_MULT * _ROW_MULT)
        nrb = _cdiv(N1P_min, tr_max)
        TR = _round_up(_cdiv(N1P_min, nrb), _ROW_MULT)
        N1P = TR * nrb
    else:
        # Row + lane tiling (extremely wide targets) -- keeps v7x VMEM safe.
        TB, BP, nbb = 1, B, B
        TR = _ROW_MULT
        N1P = _round_up(N1P_min, TR)
        nrb = N1P // TR
        tn_max = max(_LANE, (budget // (TR * bytes_per_elem)) // _LANE * _LANE)
        ncb = _cdiv(N2P_min, tn_max)
        TN = _round_up(_cdiv(N2P_min, ncb), _LANE)
        N2P = TN * ncb

    step_bytes = TB * TR * TN * bytes_per_elem
    vmem_limit = int(min(vmem_cap, 4 * step_bytes + (16 << 20)))
    return (int(TB), int(TR), int(TN), int(BP), int(N1P), int(N2P),
            int(nbb), int(nrb), int(ncb), vmem_limit)


# ----------------------------------------------------------------------------
# Pallas kernels.  Each grid step reduces its (TB, TR, TN) tile to a lane-dense
# (8, TN) partial and writes it to its OWN output block -> all grid axes parallel.
# ----------------------------------------------------------------------------
def _partial_reduce(bce):
    part = jnp.sum(bce, axis=0)                                         # (TR, TN)
    return jnp.sum(part.reshape(-1, _SUBLANE, part.shape[-1]), axis=0)  # (8, TN)


def _hung_bce_bin_kernel(pred_ref, code_ref, out_ref):
    """Binary-gt fast path: code = 2*gt + dis in {0,1,2,3}; single log per element."""
    pred = pred_ref[...]                              # (TB, TR, TN) f32
    c = code_ref[...].astype(jnp.float32)             # int8 codes 0..3 -> f32 (VPU)
    z = jnp.where(c > 0.5, 1.0, 0.0)                  # Z = OR(Hungarian(S), X_gt)
    is_gt = c > 1.5                                   # gt bit
    pred_m = z * pred                                 # ali * S  (0 on padding: z == 0)
    log_arg = jnp.where(is_gt, pred_m, 1.0 - pred_m)
    bce = -z * jnp.maximum(jnp.log(log_arg), -100.0)  # PyTorch BCE log clamp
    out_ref[...] = _partial_reduce(bce)


def _hung_bce_frac_kernel(pred_ref, gt_ref, dis_ref, out_ref):
    """Fractional-gt fallback: exact two-log BCE (matches torch semantics)."""
    pred = pred_ref[...]
    gt = gt_ref[...]
    dis = dis_ref[...].astype(jnp.float32)
    z = jnp.minimum(dis + gt, 1.0)
    pred_m = z * pred
    gt_m = z * gt
    log_p = jnp.maximum(jnp.log(pred_m), -100.0)
    log_1mp = jnp.maximum(jnp.log(1.0 - pred_m), -100.0)
    bce = -(gt_m * log_p + (1.0 - gt_m) * log_1mp)
    out_ref[...] = _partial_reduce(bce)


def _build_specs(tiles):
    TB, TR, TN = tiles[0], tiles[1], tiles[2]
    in_spec = pl.BlockSpec((TB, TR, TN), lambda bb, rb, cb: (bb, rb, cb))
    out_spec = pl.BlockSpec((None, None, None, _SUBLANE, TN),
                            lambda bb, rb, cb: (bb, rb, cb, 0, 0))
    return in_spec, out_spec


def _maybe_pad_pred(pred, tiles):
    _, _, _, BP, N1P, N2P = tiles[:6]
    B, N1, N2 = pred.shape
    if (B, N1, N2) != (BP, N1P, N2P):   # pad only when the shape actually needs it
        pred = jnp.pad(pred, ((0, BP - B), (0, N1P - N1), (0, N2P - N2)))
    return pred


@functools.partial(jax.jit, static_argnames=("tiles",))
def _loss_binary(pred, code, n_sum, *, tiles):
    TB, TR, TN, BP, N1P, N2P, nbb, nrb, ncb, vmem_limit = tiles
    pred = _maybe_pad_pred(pred, tiles)
    in_spec, out_spec = _build_specs(tiles)
    elems = BP * N1P * N2P
    partials = pl.pallas_call(
        _hung_bce_bin_kernel,
        grid_spec=pltpu.PrefetchScalarGridSpec(
            num_scalar_prefetch=0,
            grid=(nbb, nrb, ncb),
            in_specs=[in_spec, in_spec],
            out_specs=out_spec),
        out_shape=jax.ShapeDtypeStruct((nbb, nrb, ncb, _SUBLANE, TN), jnp.float32),
        compiler_params=pltpu.CompilerParams(
            dimension_semantics=("parallel", "parallel", "parallel"),
            vmem_limit_bytes=vmem_limit),
        cost_estimate=pl.CostEstimate(
            flops=10 * elems,
            transcendentals=elems,
            bytes_accessed=elems * 5 + nbb * nrb * ncb * _SUBLANE * TN * 4),
    )(pred, code)
    return jnp.sum(partials) / n_sum


@functools.partial(jax.jit, static_argnames=("tiles",))
def _loss_frac(pred, gt, dis, n_sum, *, tiles):
    TB, TR, TN, BP, N1P, N2P, nbb, nrb, ncb, vmem_limit = tiles
    pred = _maybe_pad_pred(pred, tiles)
    in_spec, out_spec = _build_specs(tiles)
    elems = BP * N1P * N2P
    partials = pl.pallas_call(
        _hung_bce_frac_kernel,
        grid_spec=pltpu.PrefetchScalarGridSpec(
            num_scalar_prefetch=0,
            grid=(nbb, nrb, ncb),
            in_specs=[in_spec, in_spec, in_spec],
            out_specs=out_spec),
        out_shape=jax.ShapeDtypeStruct((nbb, nrb, ncb, _SUBLANE, TN), jnp.float32),
        compiler_params=pltpu.CompilerParams(
            dimension_semantics=("parallel", "parallel", "parallel"),
            vmem_limit_bytes=vmem_limit),
        cost_estimate=pl.CostEstimate(
            flops=14 * elems,
            transcendentals=2 * elems,
            bytes_accessed=elems * 10 + nbb * nrb * ncb * _SUBLANE * TN * 4),
    )(pred, gt, dis)
    return jnp.sum(partials) / n_sum


# ----------------------------------------------------------------------------
# Public wrapper (forward-pass equivalent of PermutationLossHung.forward).
# ----------------------------------------------------------------------------
def permutation_loss_hung(pred_dsmat, gt_perm, src_ns, tgt_ns):
    pred_dev = jnp.asarray(pred_dsmat, jnp.float32)
    B, N1, N2 = pred_dev.shape

    src_np = np.asarray(src_ns, dtype=np.int64)
    tgt_np = np.asarray(tgt_ns, dtype=np.int64)

    # One DtoH transfer: the Hungarian solve needs pred on the host anyway; the torch
    # asserts are replicated on that copy (no extra device syncs).
    pred_np = np.asarray(pred_dev, dtype=np.float32)
    gt_np = np.asarray(gt_perm, dtype=np.float32)
    assert np.all((pred_np >= 0) & (pred_np <= 1))
    assert np.all((gt_np >= 0) & (gt_np <= 1))

    dis_np = hungarian_batch_np(pred_np, src_np, tgt_np)
    n_sum = jnp.asarray(float(src_np.sum()), jnp.float32)

    gt_binary = bool(np.all((gt_np == 0.0) | (gt_np == 1.0)))

    if gt_binary:
        # Fast path: pack gt/dis into a single int8 code plane (2 bits used), masked to
        # each instance's valid [:n1, :n2] region and padded -- all on the host (free).
        tiles = _choose_tiles(B, N1, N2, bytes_per_elem=4 + 1)
        BP, N1P, N2P = tiles[3], tiles[4], tiles[5]
        code = np.zeros((BP, N1P, N2P), dtype=np.int8)
        for b in range(B):
            n1, n2 = int(src_np[b]), int(tgt_np[b])
            code[b, :n1, :n2] = (
                (gt_np[b, :n1, :n2] > 0.5).astype(np.int8) * 2
                + (dis_np[b, :n1, :n2] > 0.5).astype(np.int8))
        return _loss_binary(pred_dev, jnp.asarray(code), n_sum, tiles=tiles)

    # Fallback (fractional gt): exact two-log BCE; gt f32, dis bf16, both masked and
    # padded host-side.
    tiles = _choose_tiles(B, N1, N2, bytes_per_elem=4 + 4 + 2)
    BP, N1P, N2P = tiles[3], tiles[4], tiles[5]
    gt_p = np.zeros((BP, N1P, N2P), dtype=np.float32)
    dis_p = np.zeros((BP, N1P, N2P), dtype=np.float32)
    for b in range(B):
        n1, n2 = int(src_np[b]), int(tgt_np[b])
        gt_p[b, :n1, :n2] = gt_np[b, :n1, :n2]
        dis_p[b, :n1, :n2] = dis_np[b, :n1, :n2]
    return _loss_frac(pred_dev, jnp.asarray(gt_p),
                      jnp.asarray(dis_p.astype(jnp.bfloat16)), n_sum, tiles=tiles)


# ----------------------------------------------------------------------------
# Pure numpy reference (for correctness check).
# ----------------------------------------------------------------------------
def _reference_loss(pred, gt, dis, src_ns, tgt_ns):
    pred = np.asarray(pred, np.float64)
    gt = np.asarray(gt, np.float64)
    dis = np.asarray(dis, np.float64)
    ali = np.minimum(dis + gt, 1.0)
    p = ali * pred
    g = ali * gt
    loss = 0.0
    n_sum = 0.0
    for b in range(pred.shape[0]):
        n1, n2 = int(src_ns[b]), int(tgt_ns[b])
        pb, gb = p[b, :n1, :n2], g[b, :n1, :n2]
        with np.errstate(divide="ignore"):
            lp = np.maximum(np.log(pb), -100.0)
            l1p = np.maximum(np.log(1.0 - pb), -100.0)
        loss += np.sum(-(gb * lp + (1.0 - gb) * l1p))
        n_sum += n1
    return loss / n_sum


if __name__ == "__main__":
    key = jax.random.PRNGKey(0)
    k1, k2 = jax.random.split(key)

    # --- Test 1: square planes, binary gt (packed-int8 single-log fast path) --
    B, N = 2, 8
    pred = jax.random.uniform(k1, (B, N, N), minval=0.05, maxval=0.95)
    src_ns = jnp.array([6, 8], dtype=jnp.int32)
    tgt_ns = jnp.array([7, 8], dtype=jnp.int32)
    gt_np = np.zeros((B, N, N), dtype=np.float32)
    for b in range(B):
        m = min(int(src_ns[b]), int(tgt_ns[b]))
        gt_np[b, np.arange(m), np.arange(m)] = 1.0

    loss = jax.block_until_ready(
        permutation_loss_hung(pred, jnp.asarray(gt_np), src_ns, tgt_ns))

    dis_ref = hungarian_batch_np(np.asarray(pred, np.float32),
                                 np.asarray(src_ns), np.asarray(tgt_ns))
    ref = _reference_loss(np.asarray(pred), gt_np, dis_ref,
                          np.asarray(src_ns), np.asarray(tgt_ns))
    np.testing.assert_allclose(float(loss), float(ref), rtol=1e-4, atol=1e-5)

    # --- Test 2: rectangular planes + fractional gt (two-log fallback path) ---
    B2, N1, N2 = 3, 10, 20
    pred2 = jax.random.uniform(k2, (B2, N1, N2), minval=0.05, maxval=0.95)
    src2 = jnp.array([7, 10, 5], dtype=jnp.int32)
    tgt2 = jnp.array([9, 20, 12], dtype=jnp.int32)
    gt2_np = np.zeros((B2, N1, N2), dtype=np.float32)
    for b in range(B2):
        m = min(int(src2[b]), int(tgt2[b]))
        gt2_np[b, np.arange(m), np.arange(m)] = 1.0
    gt2_np[0, 0, 1] = 0.5   # fractional target -> exercises the fallback kernel

    loss2 = jax.block_until_ready(
        permutation_loss_hung(pred2, jnp.asarray(gt2_np), src2, tgt2))

    dis2_ref = hungarian_batch_np(np.asarray(pred2, np.float32),
                                  np.asarray(src2), np.asarray(tgt2))
    ref2 = _reference_loss(np.asarray(pred2), gt2_np, dis2_ref,
                           np.asarray(src2), np.asarray(tgt2))
    np.testing.assert_allclose(float(loss2), float(ref2), rtol=1e-4, atol=1e-5)

    print("KERNEL_OK")
</pallas_src>

<mosaic_0001>
module attributes {stable_mosaic.version = 11 : i64} {
  func.func @_hung_bce_bin_kernel(%arg0: i32, %arg1: i32, %arg2: i32, %arg3: memref<1x32x128xf32, #tpu.memory_space<vmem>>, %arg4: memref<1x32x128xi8, #tpu.memory_space<vmem>>, %arg5: memref<1x1x1x8x128xf32, #tpu.memory_space<vmem>>) attributes {dimension_semantics = [#tpu.dimension_semantics<parallel>, #tpu.dimension_semantics<parallel>, #tpu.dimension_semantics<parallel>], iteration_bounds = array<i64: 2, 1, 1>, scalar_prefetch = 0 : i64, scratch_operands = 0 : i64, tpu.core_type = #tpu.core_type<tc>, window_params = [{transform_indices = @transform_0, window_bounds = array<i64: 1, 32, 128>}, {transform_indices = @transform_1, window_bounds = array<i64: 1, 32, 128>}, {transform_indices = @transform_2, window_bounds = array<i64: 1, 1, 1, 8, 128>}]} {
    %c0 = arith.constant 0 : index
    %c0_0 = arith.constant 0 : index
    %c0_1 = arith.constant 0 : index
    %0 = vector.load %arg3[%c0, %c0_0, %c0_1] : memref<1x32x128xf32, #tpu.memory_space<vmem>>, vector<1x32x128xf32>
    %c0_2 = arith.constant 0 : index
    %c0_3 = arith.constant 0 : index
    %c0_4 = arith.constant 0 : index
    %1 = vector.load %arg4[%c0_2, %c0_3, %c0_4] : memref<1x32x128xi8, #tpu.memory_space<vmem>>, vector<1x32x128xi8>
    %2 = arith.sitofp %1 : vector<1x32x128xi8> to vector<1x32x128xf32>
    %cst = arith.constant 5.000000e-01 : f32
    %3 = vector.broadcast %cst : f32 to vector<1x32x128xf32>
    %4 = arith.cmpf ogt, %2, %3 : vector<1x32x128xf32>
    %cst_5 = arith.constant 1.000000e+00 : f32
    %cst_6 = arith.constant 0.000000e+00 : f32
    %5 = vector.broadcast %cst_5 : f32 to vector<1x32x128xf32>
    %6 = vector.broadcast %cst_6 : f32 to vector<1x32x128xf32>
    %7 = arith.select %4, %5, %6 : vector<1x32x128xi1>, vector<1x32x128xf32>
    %cst_7 = arith.constant 1.500000e+00 : f32
    %8 = vector.broadcast %cst_7 : f32 to vector<1x32x128xf32>
    %9 = arith.cmpf ogt, %2, %8 : vector<1x32x128xf32>
    %10 = arith.mulf %7, %0 : vector<1x32x128xf32>
    %cst_8 = arith.constant 1.000000e+00 : f32
    %11 = vector.broadcast %cst_8 : f32 to vector<1x32x128xf32>
    %12 = arith.subf %11, %10 : vector<1x32x128xf32>
    %13 = arith.select %9, %10, %12 : vector<1x32x128xi1>, vector<1x32x128xf32>
    %cst_9 = arith.constant 0.000000e+00 : f32
    %14 = vector.broadcast %cst_9 : f32 to vector<1x32x128xf32>
    %15 = arith.subf %14, %7 : vector<1x32x128xf32>
    %16 = math.log %13 : vector<1x32x128xf32>
    %cst_10 = arith.constant -1.000000e+02 : f32
    %17 = vector.broadcast %cst_10 : f32 to vector<1x32x128xf32>
    %18 = arith.maximumf %16, %17 : vector<1x32x128xf32>
    %19 = arith.mulf %15, %18 : vector<1x32x128xf32>
    %cst_11 = arith.constant dense<0.000000e+00> : vector<32x128xf32>
    %20 = vector.multi_reduction <add>, %19, %cst_11 [0] : vector<1x32x128xf32> to vector<32x128xf32>
    %21 = vector.shape_cast %20 : vector<32x128xf32> to vector<4x8x128xf32>
    %cst_12 = arith.constant dense<0.000000e+00> : vector<8x128xf32>
    %22 = vector.multi_reduction <add>, %21, %cst_12 [0] : vector<4x8x128xf32> to vector<8x128xf32>
    %c0_13 = arith.constant 0 : index
    %c0_14 = arith.constant 0 : index
    %c0_15 = arith.constant 0 : index
    %c0_16 = arith.constant 0 : index
    %c0_17 = arith.constant 0 : index
    %23 = vector.load %arg5[%c0_13, %c0_14, %c0_15, %c0_16, %c0_17] : memref<1x1x1x8x128xf32, #tpu.memory_space<vmem>>, vector<1x1x1x8x128xf32>
    %24 = vector.shape_cast %23 : vector<1x1x1x8x128xf32> to vector<8x128xf32>
    %25 = vector.shape_cast %22 : vector<8x128xf32> to vector<1x1x1x8x128xf32>
    tpu.vector_store %arg5[%c0_13, %c0_14, %c0_15, %c0_16, %c0_17], %25 {strides = array<i32>} : memref<1x1x1x8x128xf32, #tpu.memory_space<vmem>>, vector<1x1x1x8x128xf32>,
    return
  }
  func.func @transform_0(%arg0: i32, %arg1: i32, %arg2: i32) -> (i32, i32, i32) {
    %c0_i32 = arith.constant 0 : i32
    return %arg0, %arg1, %arg2 : i32, i32, i32
  }
  func.func @transform_1(%arg0: i32, %arg1: i32, %arg2: i32) -> (i32, i32, i32) {
    %c0_i32 = arith.constant 0 : i32
    return %arg0, %arg1, %arg2 : i32, i32, i32
  }
  func.func @transform_2(%arg0: i32, %arg1: i32, %arg2: i32) -> (i32, i32, i32, i32, i32) {
    %c0_i32 = arith.constant 0 : i32
    %c0_i32_0 = arith.constant 0 : i32
    %c0_i32_1 = arith.constant 0 : i32
    return %arg0, %arg1, %arg2, %c0_i32, %c0_i32_0 : i32, i32, i32, i32, i32
  }
}

</mosaic_0001>

<llo_original>
// kernel: _loss_binary.1
$region0: #{_loss_binary.1}
  #allocation0 [shape = 'u32[]', space=smem, size = 0x4, offset = 0x4, fixed_abs, tag = 'smem constant byte address 0x4 - core index']
  #allocation1 [shape = 'u32[144,128]{1,0:T(1,128)}', space=vmem, size = 0x12000, scoped, tag = 'internal scratch']
  %s0 = inlined_call_operand.vmem [shape: f32[2,32,128], index: 0, kind: input, shape index: {}]
  %s1 = inlined_call_operand.vmem [shape: s8[2,32,128], index: 1, kind: input, shape index: {}]
  %s2 = inlined_call_operand.vmem [shape: f32[2,1,1,8,128], index: 2, kind: output, shape index: {}]
  %s3 = sld [smem:[#allocation0]]
  $region41: #{_loss_binary.1} parent=0
    _
  %s5 = ssub.s32 1, %s3
  %s6 = scalar_select 0, %s5, %s3
  loop: start=0, step=1, limit=4
  $region2: #{_loss_binary.1} parent=0 // loop_pre_header
    _
  $region3: #{_loss_binary.1} parent=0 // loop_header
    %s8 = sphi 0, %s12
    %p9 = scmp.ge.s32.totalorder %s8, 4
    %s15 = sphi 0, %s34
    %s16 = sphi 0, %s30
    %s17 = sphi 0, %s26
    %s18 = sphi 0, %s15
    %s19 = sphi 0, %s16
    %s20 = sphi 0, %s17
    %s21 = sphi 0, %s18
    %s22 = sphi 0, %s19
    %s23 = sphi 0, %s20
    %s41 = sphi 0, %s43
    %s44 = sphi 0, %s41
    %s45 = sphi 0, %s44
    %s61 = sphi 0, %s45
    %s71 = sphi 0, %s73
    %s74 = sphi 0, %s71
    %s75 = sphi 0, %s74
    %s91 = sphi 0, %s75
    %s101 = sphi 0, %s103
    %s104 = sphi 0, %s101
    %s105 = sphi 0, %s104
    %s121 = sphi 0, %s105
  $region4: #{_loss_binary.1} parent=0 // loop_header_branch
    %11 = sbr.rel (%p9) target = $region8
  $region5: #{_loss_binary.1} parent=0 // loop_body
    %s13 = ssub.s32 %s8, 1
    %s14 = ssub.s32 %s8, 2
    %s24 = sadd.s32 1, %s17
    %p25 = scmp.ge.s32.totalorder %s24, 1
    %s26 = scalar_select %p25, 0, %s24
    %s27 = sadd.s32 1, %s16
    %s28 = scalar_select %p25, %s27, %s16
    %p29 = scmp.ge.s32.totalorder %s28, 1
    %s30 = scalar_select %p29, 0, %s28
    %s31 = sadd.s32 1, %s15
    %s32 = scalar_select %p29, %s31, %s15
    %p33 = scmp.ge.s32.totalorder %s32, 2
    %s34 = scalar_select %p33, 0, %s32
    %s35 = ssub.s32 %s15, %s34
    %s36 = ssub.s32 %s16, %s30
    %s37 = sor.u32 %s35, %s36
    %s38 = ssub.s32 %s17, %s26
    %s39 = sor.u32 %s37, %s38
    %p40 = scmp.eq.s32.totalorder %s39, 0
    %s42 = sadd.s32 %s41, 1
    %s43 = scalar_select %p40, %s41, %s42
    %p46 = pneg %p40
    %p47 = scmp.eq.s32.totalorder %s8, 1
    %p48 = por %p46, %p47
    %p49 = scmp.ne.s32.totalorder %s41, %s44
    %p50 = scmp.eq.s32.totalorder %s8, 0
    %p51 = por %p49, %p50
    %p52 = scmp.ne.s32.totalorder %s41, %s44
    %p53 = scmp.eq.s32.totalorder %s13, 1
    %p54 = por %p52, %p53
    %p55 = scmp.ne.s32.totalorder %s44, %s45
    %p56 = scmp.eq.s32.totalorder %s13, 0
    %p57 = por %p55, %p56
    %p58 = scmp.ne.s32.totalorder %s44, %s45
    %p59 = scmp.eq.s32.totalorder %s14, 1
    %p60 = por %p58, %p59
    %p62 = scmp.ne.s32.totalorder %s45, %s61
    %p63 = scmp.eq.s32.totalorder %s14, 0
    %p64 = por %p62, %p63
    %s65 = ssub.s32 %s15, %s34
    %s66 = ssub.s32 %s16, %s30
    %s67 = sor.u32 %s65, %s66
    %s68 = ssub.s32 %s17, %s26
    %s69 = sor.u32 %s67, %s68
    %p70 = scmp.eq.s32.totalorder %s69, 0
    %s72 = sadd.s32 %s71, 1
    %s73 = scalar_select %p70, %s71, %s72
    %p76 = pneg %p70
    %p77 = scmp.eq.s32.totalorder %s8, 1
    %p78 = por %p76, %p77
    %p79 = scmp.ne.s32.totalorder %s71, %s74
    %p80 = scmp.eq.s32.totalorder %s8, 0
    %p81 = por %p79, %p80
    %p82 = scmp.ne.s32.totalorder %s71, %s74
    %p83 = scmp.eq.s32.totalorder %s13, 1
    %p84 = por %p82, %p83
    %p85 = scmp.ne.s32.totalorder %s74, %s75
    %p86 = scmp.eq.s32.totalorder %s13, 0
    %p87 = por %p85, %p86
    %p88 = scmp.ne.s32.totalorder %s74, %s75
    %p89 = scmp.eq.s32.totalorder %s14, 1
    %p90 = por %p88, %p89
    %p92 = scmp.ne.s32.totalorder %s75, %s91
    %p93 = scmp.eq.s32.totalorder %s14, 0
    %p94 = por %p92, %p93
    %s95 = ssub.s32 %s15, %s34
    %s96 = ssub.s32 %s16, %s30
    %s97 = sor.u32 %s95, %s96
    %s98 = ssub.s32 %s17, %s26
    %s99 = sor.u32 %s97, %s98
    %p100 = scmp.eq.s32.totalorder %s99, 0
    %s102 = sadd.s32 %s101, 1
    %s103 = scalar_select %p100, %s101, %s102
    %p106 = pneg %p100
    %p107 = scmp.eq.s32.totalorder %s8, 1
    %p108 = por %p106, %p107
    %p109 = scmp.ne.s32.totalorder %s101, %s104
    %p110 = scmp.eq.s32.totalorder %s8, 0
    %p111 = por %p109, %p110
    %p112 = scmp.ne.s32.totalorder %s101, %s104
    %p113 = scmp.eq.s32.totalorder %s13, 1
    %p114 = por %p112, %p113
    %p115 = scmp.ne.s32.totalorder %s104, %s105
    %p116 = scmp.eq.s32.totalorder %s13, 0
    %p117 = por %p115, %p116
    %p118 = scmp.ne.s32.totalorder %s104, %s105
    %p119 = scmp.eq.s32.totalorder %s14, 1
    %p120 = por %p118, %p119
    %p122 = scmp.ne.s32.totalorder %s105, %s121
    %p123 = scmp.eq.s32.totalorder %s14, 0
    %p124 = por %p122, %p123
    %p125 = scmp.le.s32.totalorder 1, %s8
    %p126 = scmp.lt.s32.totalorder %s8, 3
    %p127 = pnand %p125, %p126
    %p128 = pneg %p127
    // Predicated region
    $region9: #{_loss_binary.1} parent=5 // pred_check
      _
    $region10: #{_loss_binary.1} parent=5 // pred_check_branch
      %130 = sbr.rel (%p127) target = $region12
    $region11: #{_loss_binary.1} parent=5 // pred_region
      %s131 = ssub.s32 %s8, 1
    $region12: #{_loss_binary.1} parent=5 // pred_fallthru
      _
    %p132 = scmp.lt.s32.totalorder %s8, 2
    // Predicated region
    $region13: #{_loss_binary.1} parent=5 // pred_check
      %p133 = pneg %p132
    $region14: #{_loss_binary.1} parent=5 // pred_check_branch
      %135 = sbr.rel (%p133) target = $region16
    $region15: #{_loss_binary.1} parent=5 // pred_region
      // Predicated region
      $region17: #{_loss_binary.1} parent=15 // pred_check
        %p136 = pneg %p51
      $region18: #{_loss_binary.1} parent=15 // pred_check_branch
        %138 = sbr.rel (%p136) target = $region20
      $region19: #{_loss_binary.1} parent=15 // pred_region
        %s139 = smul.u32 4, %s16
        %p140 = scmp.lt.s32.totalorder %s15, 1
        %s141 = scalar_select %p140, %s15, 1
        %p142 = scmp.lt.s32.totalorder %s139, 3
        %s143 = scalar_select %p142, %s139, 3
        %p144 = scmp.lt.s32.totalorder %s17, 0
        %s145 = scalar_select %p144, %s17, 0
        %s146 = sadd.s32 %s145, %s143
        %s147 = smul.addr %s141, 4
        %s148 = sadd.s32 %s146, %s147
        %s149 = smul.addr %s148, 8
        %s150 = scalar_lea.vmem %s0, %s149
        %s151 = smul.u32 4, %s16
      $region20: #{_loss_binary.1} parent=15 // pred_fallthru
        _
      // Predicated region
      $region21: #{_loss_binary.1} parent=15 // pred_check
        %p152 = pneg %p81
      $region22: #{_loss_binary.1} parent=15 // pred_check_branch
        %154 = sbr.rel (%p152) target = $region24
      $region23: #{_loss_binary.1} parent=15 // pred_region
        %p155 = scmp.lt.s32.totalorder %s15, 1
        %s156 = scalar_select %p155, %s15, 1
        %p157 = scmp.lt.s32.totalorder %s16, 0
        %s158 = scalar_select %p157, %s16, 0
        %p159 = scmp.lt.s32.totalorder %s17, 0
        %s160 = scalar_select %p159, %s17, 0
        %s161 = sadd.s32 %s160, %s158
        %s162 = sadd.s32 %s161, %s156
        %s163 = smul.addr %s162, 8
        %s164 = scalar_lea.vmem %s1, %s163
      $region24: #{_loss_binary.1} parent=15 // pred_fallthru
        _
    $region16: #{_loss_binary.1} parent=5 // pred_fallthru
      _
    %p165 = scmp.le.s32.totalorder 1, %s8
    %p166 = scmp.lt.s32.totalorder %s8, 3
    %p167 = pnand %p165, %p166
    %p168 = pneg %p167
    // Predicated region
    $region25: #{_loss_binary.1} parent=5 // pred_check
      _
    $region26: #{_loss_binary.1} parent=5 // pred_check_branch
      %170 = sbr.rel (%p167) target = $region28
    $region27: #{_loss_binary.1} parent=5 // pred_region
      %s171 = ssub.s32 %s8, 1
      %s172 = smul.u32 4, %s19
      %p173 = scmp.lt.s32.totalorder %s18, 1
      %s174 = scalar_select %p173, %s18, 1
      %p175 = scmp.lt.s32.totalorder %s172, 3
      %s176 = scalar_select %p175, %s172, 3
      %p177 = scmp.lt.s32.totalorder %s20, 0
      %s178 = scalar_select %p177, %s20, 0
      %s179 = sadd.s32 %s178, %s176
      %s180 = smul.addr %s174, 4
      %s181 = sadd.s32 %s179, %s180
      %s182 = smul.addr %s181, 8
      %s183 = scalar_lea.vmem %s0, %s182
      %p184 = pneg %p57
      %p185 = pneg %p54
      %p186 = scmp.lt.s32.totalorder %s18, 1
      %s187 = scalar_select %p186, %s18, 1
      %p188 = scmp.lt.s32.totalorder %s19, 0
      %s189 = scalar_select %p188, %s19, 0
      %p190 = scmp.lt.s32.totalorder %s20, 0
      %s191 = scalar_select %p190, %s20, 0
      %s192 = sadd.s32 %s191, %s189
      %s193 = sadd.s32 %s192, %s187
      %s194 = smul.addr %s193, 8
      %s195 = scalar_lea.vmem %s1, %s194
      %p196 = pneg %p87
      %p197 = pneg %p84
      %p198 = pneg %p117
      %p199 = pneg %p114
      %p200 = scmp.lt.s32.totalorder %s18, 1
      %s201 = scalar_select %p200, %s18, 1
      %p202 = scmp.lt.s32.totalorder %s19, 0
      %s203 = scalar_select %p202, %s19, 0
      %p204 = scmp.lt.s32.totalorder %s20, 0
      %s205 = scalar_select %p204, %s20, 0
      %s206 = sadd.s32 %s205, %s203
      %s207 = sadd.s32 %s206, %s201
      %s208 = smul.addr %s207, 8
      %s209 = scalar_lea.vmem %s2, %s208
      %s210 = smul.u32 4, %s19
      %p211 = scmp.lt.s32.totalorder %s18, 1
      %s212 = scalar_select %p211, %s18, 1
      %p213 = scmp.lt.s32.totalorder %s210, 3
      %s214 = scalar_select %p213, %s210, 3
      %p215 = scmp.lt.s32.totalorder %s20, 0
      %s216 = scalar_select %p215, %s20, 0
      %s217 = sadd.s32 %s216, %s214
      %s218 = smul.addr %s212, 4
      %s219 = sadd.s32 %s217, %s218
      %s220 = smul.addr %s219, 8
      %s221 = scalar_lea.vmem %s0, %s220
      %s222 = smul.u32 4, %s19
      %p223 = scmp.lt.s32.totalorder %s18, 1
      %s224 = scalar_select %p223, %s18, 1
      %p225 = scmp.lt.s32.totalorder %s19, 0
      %s226 = scalar_select %p225, %s19, 0
      %p227 = scmp.lt.s32.totalorder %s20, 0
      %s228 = scalar_select %p227, %s20, 0
      %s229 = sadd.s32 %s228, %s226
      %s230 = sadd.s32 %s229, %s224
      %s231 = smul.addr %s230, 8
      %s232 = scalar_lea.vmem %s1, %s231
      %p233 = scmp.lt.s32.totalorder %s18, 1
      %s234 = scalar_select %p233, %s18, 1
      %p235 = scmp.lt.s32.totalorder %s19, 0
      %s236 = scalar_select %p235, %s19, 0
      %p237 = scmp.lt.s32.totalorder %s20, 0
      %s238 = scalar_select %p237, %s20, 0
      %s239 = sadd.s32 %s238, %s236
      %s240 = sadd.s32 %s239, %s234
      %s241 = smul.addr %s240, 8
      %s242 = scalar_lea.vmem %s2, %s241
      %v243 = vld [vmem:[%s221] sm:$0xff]
      %v244 = vld [vmem:[%s221 + $0x8] sm:$0xff]
      %v245 = vld [vmem:[%s221 + $0x10] sm:$0xff]
      %v246 = vld [vmem:[%s221 + $0x18] sm:$0xff]
      %v247 = vld [vmem:[%s232] sm:$0xff]
      %v248 = vunpack.c.0.s8 %v247
      %v249 = vunpack.c.1.s8 %v247
      %v250 = vunpack.c.2.s8 %v247
      %v251 = vunpack.c.3.s8 %v247
      %v252 = vcvt.s32.f32 %v248
      %v253 = vcvt.s32.f32 %v249
      %v254 = vcvt.s32.f32 %v250
      %v255 = vcvt.s32.f32 %v251
      %vm256 = vcmp.gt.f32.partialorder %v252, 0.5
      %vm257 = vcmp.gt.f32.partialorder %v253, 0.5
      %vm258 = vcmp.gt.f32.partialorder %v254, 0.5
      %vm259 = vcmp.gt.f32.partialorder %v255, 0.5
      %v260 = vsel %vm256, 1.0, 0.0
      %v261 = vsel %vm257, 1.0, 0.0
      %v262 = vsel %vm258, 1.0, 0.0
      %v263 = vsel %vm259, 1.0, 0.0
      %vm264 = vcmp.gt.f32.partialorder %v252, 1.5
      %vm265 = vcmp.gt.f32.partialorder %v253, 1.5
      %vm266 = vcmp.gt.f32.partialorder %v254, 1.5
      %vm267 = vcmp.gt.f32.partialorder %v255, 1.5
      %v268 = vmul.f32 %v260, %v243
      %v269 = vmul.f32 %v261, %v244
      %v270 = vmul.f32 %v262, %v245
      %v271 = vmul.f32 %v263, %v246
      %v272 = vsub.f32 1.0, %v268
      %v273 = vsub.f32 1.0, %v269
      %v274 = vsub.f32 1.0, %v270
      %v275 = vsub.f32 1.0, %v271
      %v276 = vsel %vm264, %v268, %v272
      %v277 = vsel %vm265, %v269, %v273
      %v278 = vsel %vm266, %v270, %v274
      %v279 = vsel %vm267, %v271, %v275
      %v280 = vsub.f32 0.0, %v260
      %v281 = vsub.f32 0.0, %v261
      %v282 = vsub.f32 0.0, %v262
      %v283 = vsub.f32 0.0, %v263
      %v284 = vlog2.pop %v276
      %v285 = vmul.f32 %v284, 0.6931472
      %v286 = vlog2.pop %v277
      %v287 = vmul.f32 %v286, 0.6931472
      %v288 = vlog2.pop %v278
      %v289 = vmul.f32 %v288, 0.6931472
      %v290 = vlog2.pop %v279
      %v291 = vmul.f32 %v290, 0.6931472
      %v292 = vmax.f32 %v285, -100.0
      %v293 = vmax.f32 %v287, -100.0
      %v294 = vmax.f32 %v289, -100.0
      %v295 = vmax.f32 %v291, -100.0
      %v296 = vmul.f32 %v280, %v292
      %v297 = vmul.f32 %v281, %v293
      %v298 = vmul.f32 %v282, %v294
      %v299 = vmul.f32 %v283, %v295
      %v300 = vadd.f32 %v296, 0.0
      %v301 = vadd.f32 %v297, 0.0
      %v302 = vadd.f32 %v298, 0.0
      %v303 = vadd.f32 %v299, 0.0
      %v304 = vadd.f32 %v300, %v301
      %v305 = vadd.f32 %v304, %v302
      %v306 = vadd.f32 %v305, %v303
      %307 = vst [vmem:[%s242] sm:$0xff] %v306
      %p308 = scmp.lt.s32.totalorder %s18, 1
      %s309 = scalar_select %p308, %s18, 1
      %p310 = scmp.lt.s32.totalorder %s19, 0
      %s311 = scalar_select %p310, %s19, 0
      %p312 = scmp.lt.s32.totalorder %s20, 0
      %s313 = scalar_select %p312, %s20, 0
      %s314 = sadd.s32 %s313, %s311
      %s315 = sadd.s32 %s314, %s309
      %s316 = smul.addr %s315, 8
      %s317 = scalar_lea.vmem %s2, %s316
      // Predicated region
      $region29: #{_loss_binary.1} parent=27 // pred_check
        %p318 = pneg %p114
      $region30: #{_loss_binary.1} parent=27 // pred_check_branch
        %320 = sbr.rel (%p318) target = $region32
      $region31: #{_loss_binary.1} parent=27 // pred_region
        _
      $region32: #{_loss_binary.1} parent=27 // pred_fallthru
        _
    $region28: #{_loss_binary.1} parent=5 // pred_fallthru
      _
    %p321 = scmp.le.s32.totalorder 2, %s8
    // Predicated region
    $region33: #{_loss_binary.1} parent=5 // pred_check
      %p322 = pneg %p321
    $region34: #{_loss_binary.1} parent=5 // pred_check_branch
      %324 = sbr.rel (%p322) target = $region36
    $region35: #{_loss_binary.1} parent=5 // pred_region
      %s325 = ssub.s32 %s8, 2
      // Predicated region
      $region37: #{_loss_binary.1} parent=35 // pred_check
        %p326 = pneg %p120
      $region38: #{_loss_binary.1} parent=35 // pred_check_branch
        %328 = sbr.rel (%p326) target = $region40
      $region39: #{_loss_binary.1} parent=35 // pred_region
        %p329 = scmp.lt.s32.totalorder %s21, 1
        %s330 = scalar_select %p329, %s21, 1
        %p331 = scmp.lt.s32.totalorder %s22, 0
        %s332 = scalar_select %p331, %s22, 0
        %p333 = scmp.lt.s32.totalorder %s23, 0
        %s334 = scalar_select %p333, %s23, 0
        %s335 = sadd.s32 %s334, %s332
        %s336 = sadd.s32 %s335, %s330
        %s337 = smul.addr %s336, 8
        %s338 = scalar_lea.vmem %s2, %s337
      $region40: #{_loss_binary.1} parent=35 // pred_fallthru
        _
    $region36: #{_loss_binary.1} parent=5 // pred_fallthru
      _
  $region6: #{_loss_binary.1} parent=0 // loop_footer
    %s12 = sadd.s32 1, %s8
  $region7: #{_loss_binary.1} parent=0 // loop_footer_branch
    %7 = sbr.rel target = $region3
  $region8: #{_loss_binary.1} parent=0 // loop_exit
    _

</llo_original>
